<compile_context>
chip_gen: v6e
topology: v6e:2x2x1
jax: 0.10.0
libtpu: 0.0.40
codegen_flags: <defaults>
</compile_context>

<pallas_src>
import functools

import jax
import jax.numpy as jnp
from jax.experimental import pallas as pl
from jax.experimental.pallas import tpu as pltpu


def _nt_xent_kernel(x1r_ref, x2r_ref, x1c_ref, x2c_ref, loss_ref,
                    d1_ref, d2_ref, lp_ref,
                    *, t, batch, tm, tn, use_bf16):
    i = pl.program_id(0)
    j = pl.program_id(1)
    n_i = pl.num_programs(0)
    n_j = pl.num_programs(1)

    inv_t = jnp.float32(1.0 / t)
    eps_sq = jnp.float32(1e-24)  # (F.normalize eps)^2

    r0 = pl.multiple_of(i * tm, tm)
    c0 = pl.multiple_of(j * tn, tn)

    # ---- zero the persistent per-row accumulators once, at the first step ----
    @pl.when((i == 0) & (j == 0))
    def _init():
        d1_ref[...] = jnp.zeros_like(d1_ref)
        d2_ref[...] = jnp.zeros_like(d2_ref)
        lp_ref[...] = jnp.zeros_like(lp_ref)

    # ---- load + L2-normalize this step's row / column blocks -----------------
    def _normalize(x):
        ss = jnp.sum(x * x, axis=1, keepdims=True)
        # == x / max(||x||, 1e-12), but the divide becomes an EUP rsqrt.
        return x * jax.lax.rsqrt(jnp.maximum(ss, eps_sq))

    z1r = _normalize(x1r_ref[...].astype(jnp.float32))   # (TM, D)
    z2r = _normalize(x2r_ref[...].astype(jnp.float32))   # (TM, D)
    z1c = _normalize(x1c_ref[...].astype(jnp.float32))   # (TN, D)
    z2c = _normalize(x2c_ref[...].astype(jnp.float32))   # (TN, D)

    # ---- once per row block: positive-pair log-sim + diagonal correction -----
    @pl.when(j == 0)
    def _row_once():
        # log(pos) directly -- no exp()/log() round trip.
        lp_ref[pl.ds(r0, tm), :] = (
            jnp.sum(z1r * z2r, axis=1, keepdims=True) * inv_t)
        # The reference masks the main diagonal of the 2Bx2B matrix; that is
        # equivalent to subtracting exp(z_k . z_k / t) from each row sum
        # (exact even for zero rows, and needs no BxB iota masks).
        d1_ref[pl.ds(r0, tm), :] += -jnp.exp(
            jnp.sum(z1r * z1r, axis=1, keepdims=True) * inv_t)
        d2_ref[pl.ds(r0, tm), :] += -jnp.exp(
            jnp.sum(z2r * z2r, axis=1, keepdims=True) * inv_t)

    # ---- similarity tiles: three matmuls; the e21 tile is reused from e12 ----
    # bf16 MXU inputs give ~3x matmul throughput but shift the loss at ~1e-3,
    # so it is opt-in (f32 by default to match the reference at 1e-5).
    mm_dtype = jnp.bfloat16 if use_bf16 else jnp.float32
    a1, a2 = z1r.astype(mm_dtype), z2r.astype(mm_dtype)
    b1, b2 = z1c.astype(mm_dtype), z2c.astype(mm_dtype)

    dn = (((1,), (1,)), ((), ()))   # contract the feature dim of both operands
    e11 = jnp.exp(jax.lax.dot_general(
        a1, b1, dn, preferred_element_type=jnp.float32) * inv_t)  # (TM, TN)
    e12 = jnp.exp(jax.lax.dot_general(
        a1, b2, dn, preferred_element_type=jnp.float32) * inv_t)  # (TM, TN)
    e22 = jnp.exp(jax.lax.dot_general(
        a2, b2, dn, preferred_element_type=jnp.float32) * inv_t)  # (TM, TN)

    d1_ref[pl.ds(r0, tm), :] += (jnp.sum(e11, axis=1, keepdims=True)
                                 + jnp.sum(e12, axis=1, keepdims=True))
    d2_ref[pl.ds(r0, tm), :] += jnp.sum(e22, axis=1, keepdims=True)

    # Row sums of the skipped e21 tile == column sums of e12. A ones-vector
    # matmul (contract on dim 0, same pattern as flash-attn dV) yields them
    # directly in (TN, 1) layout -- no XLU transpose needed.
    ones_tm = jnp.ones((tm, 1), jnp.float32)
    cs12 = jax.lax.dot_general(e12, ones_tm, (((0,), (0,)), ((), ())),
                               preferred_element_type=jnp.float32)  # (TN, 1)
    d2_ref[pl.ds(c0, tn), :] += cs12

    # ---- finalize: per-row losses -> scalar mean ------------------------------
    @pl.when((i == n_i - 1) & (j == n_j - 1))
    def _finalize():
        d1 = d1_ref[...]
        d2 = d2_ref[...]
        lp = lp_ref[...]
        loss_rows = (jnp.log(d1) - lp) + (jnp.log(d2) - lp)
        loss_ref[0, 0] = jnp.sum(loss_rows) * jnp.float32(1.0 / (2 * batch))


def nt_xent_loss(x1, x2, t, *, block_rows=None, block_cols=None,
                 use_bf16_matmul=False):
    """NT-Xent loss matching the PyTorch NT_xent module (returns a scalar)."""
    assert x1.shape == x2.shape and x1.ndim == 2
    batch, dim = x1.shape

    def _pick(block):
        if block is not None:
            return block
        # Largest divisor of `batch` that is <= 256 and a multiple of 8
        # (sublane-aligned); otherwise fall back to a single full-extent block.
        for cand in range(min(batch, 256), 0, -1):
            if batch % cand == 0 and cand % 8 == 0:
                return cand
        return batch

    tm = _pick(block_rows)
    tn = _pick(block_cols)
    assert batch % tm == 0 and batch % tn == 0
    assert tm == batch or tm % 8 == 0
    assert tn == batch or tn % 8 == 0

    kernel = functools.partial(_nt_xent_kernel, t=float(t), batch=batch,
                               tm=tm, tn=tn, use_bf16=use_bf16_matmul)

    grid_spec = pltpu.PrefetchScalarGridSpec(
        num_scalar_prefetch=0,
        grid=(batch // tm, batch // tn),
        in_specs=[
            pl.BlockSpec((tm, dim), lambda i, j: (i, 0)),   # x1 row block
            pl.BlockSpec((tm, dim), lambda i, j: (i, 0)),   # x2 row block
            pl.BlockSpec((tn, dim), lambda i, j: (j, 0)),   # x1 column block
            pl.BlockSpec((tn, dim), lambda i, j: (j, 0)),   # x2 column block
        ],
        out_specs=pl.BlockSpec((1, 1), lambda i, j: (0, 0),
                               memory_space=pltpu.MemorySpace.SMEM),
        scratch_shapes=[
            pltpu.VMEM((batch, 1), jnp.float32),   # denominators for z1 rows
            pltpu.VMEM((batch, 1), jnp.float32),   # denominators for z2 rows
            pltpu.VMEM((batch, 1), jnp.float32),   # log positive similarity
        ],
    )

    out = pl.pallas_call(
        kernel,
        out_shape=jax.ShapeDtypeStruct((1, 1), jnp.float32),
        grid_spec=grid_spec,
        compiler_params=pltpu.CompilerParams(
            # Sequential grid: the e12 column-sum reuse accumulates into row
            # blocks owned by other grid rows, so no axis may be 'parallel'.
            dimension_semantics=("arbitrary", "arbitrary"),
        ),
    )(x1, x2, x1, x2)   # native dtype in; the f32 cast is done in-kernel (VPU)
    return out[0, 0]


def _nt_xent_ref(x1, x2, t):
    """Pure-JAX reference mirroring the PyTorch forward, for a sanity check."""
    def normalize(x):
        n = jnp.sqrt(jnp.sum(x * x, axis=1, keepdims=True))
        return x / jnp.maximum(n, 1e-12)

    z1, z2 = normalize(x1), normalize(x2)
    b = x1.shape[0]
    out = jnp.concatenate([z1, z2], axis=0)
    sim = jnp.exp(out @ out.T / t)
    mask = 1.0 - jnp.eye(2 * b, dtype=sim.dtype)
    denom = jnp.sum(sim * mask, axis=1)
    pos = jnp.exp(jnp.sum(z1 * z2, axis=1) / t)
    pos = jnp.concatenate([pos, pos], axis=0)
    return jnp.mean(-jnp.log(pos / denom))


if __name__ == "__main__":
    key = jax.random.PRNGKey(0)
    k1, k2 = jax.random.split(key)

    # Small but multi-tile: a 2x2 grid of 16-row blocks exercises the init /
    # accumulate / cross-block column-sum / finalize paths.
    B, D = 32, 128
    temperature = 0.5

    x1 = jax.random.normal(k1, (B, D), dtype=jnp.float32)
    x2 = jax.random.normal(k2, (B, D), dtype=jnp.float32)

    loss = nt_xent_loss(x1, x2, temperature, block_rows=16, block_cols=16)
    loss = jax.block_until_ready(loss)

    ref = _nt_xent_ref(x1, x2, temperature)
    assert jnp.allclose(loss, ref, rtol=1e-5, atol=1e-5), (loss, ref)

    print("KERNEL_OK")
</pallas_src>

<mosaic_0001>
module attributes {stable_mosaic.version = 11 : i64} {
  func.func @_nt_xent_kernel(%arg0: i32, %arg1: i32, %arg2: memref<16x128xf32, #tpu.memory_space<vmem>>, %arg3: memref<16x128xf32, #tpu.memory_space<vmem>>, %arg4: memref<16x128xf32, #tpu.memory_space<vmem>>, %arg5: memref<16x128xf32, #tpu.memory_space<vmem>>, %arg6: memref<1x1xf32, #tpu.memory_space<smem>>, %arg7: memref<32x1xf32, #tpu.memory_space<vmem>>, %arg8: memref<32x1xf32, #tpu.memory_space<vmem>>, %arg9: memref<32x1xf32, #tpu.memory_space<vmem>>) attributes {dimension_semantics = [#tpu.dimension_semantics<arbitrary>, #tpu.dimension_semantics<arbitrary>], iteration_bounds = array<i64: 2, 2>, scalar_prefetch = 0 : i64, scratch_operands = 3 : i64, tpu.core_type = #tpu.core_type<tc>, window_params = [{transform_indices = @transform_0, window_bounds = array<i64: 16, 128>}, {transform_indices = @transform_1, window_bounds = array<i64: 16, 128>}, {transform_indices = @transform_2, window_bounds = array<i64: 16, 128>}, {transform_indices = @transform_3, window_bounds = array<i64: 16, 128>}, {transform_indices = @transform_4, window_bounds = array<i64: 1, 1>}]} {
    %c16_i32 = arith.constant 16 : i32
    %0 = arith.muli %arg0, %c16_i32 : i32
    %1 = tpu.assume_multiple %0, 16 : i32
    %c16_i32_0 = arith.constant 16 : i32
    %2 = arith.muli %arg1, %c16_i32_0 : i32
    %3 = tpu.assume_multiple %2, 16 : i32
    %c0_i32 = arith.constant 0 : i32
    %4 = arith.cmpi eq, %arg0, %c0_i32 : i32
    %c0_i32_1 = arith.constant 0 : i32
    %5 = arith.cmpi eq, %arg1, %c0_i32_1 : i32
    %6 = arith.andi %4, %5 : i1
    %7 = arith.extui %6 : i1 to i32
    %c0_i32_2 = arith.constant 0 : i32
    %8 = arith.cmpi ne, %7, %c0_i32_2 : i32
    scf.if %8 {
      %cst_39 = arith.constant 0.000000e+00 : f32
      %89 = vector.broadcast %cst_39 : f32 to vector<32x1xf32>
      %c0_40 = arith.constant 0 : index
      %c0_41 = arith.constant 0 : index
      %90 = vector.load %arg7[%c0_40, %c0_41] : memref<32x1xf32, #tpu.memory_space<vmem>>, vector<32x1xf32>
      tpu.vector_store %arg7[%c0_40, %c0_41], %89 {strides = array<i32>} : memref<32x1xf32, #tpu.memory_space<vmem>>, vector<32x1xf32>,
      %cst_42 = arith.constant 0.000000e+00 : f32
      %91 = vector.broadcast %cst_42 : f32 to vector<32x1xf32>
      %c0_43 = arith.constant 0 : index
      %c0_44 = arith.constant 0 : index
      %92 = vector.load %arg8[%c0_43, %c0_44] : memref<32x1xf32, #tpu.memory_space<vmem>>, vector<32x1xf32>
      tpu.vector_store %arg8[%c0_43, %c0_44], %91 {strides = array<i32>} : memref<32x1xf32, #tpu.memory_space<vmem>>, vector<32x1xf32>,
      %cst_45 = arith.constant 0.000000e+00 : f32
      %93 = vector.broadcast %cst_45 : f32 to vector<32x1xf32>
      %c0_46 = arith.constant 0 : index
      %c0_47 = arith.constant 0 : index
      %94 = vector.load %arg9[%c0_46, %c0_47] : memref<32x1xf32, #tpu.memory_space<vmem>>, vector<32x1xf32>
      tpu.vector_store %arg9[%c0_46, %c0_47], %93 {strides = array<i32>} : memref<32x1xf32, #tpu.memory_space<vmem>>, vector<32x1xf32>,
    } else {
    }
    %c0 = arith.constant 0 : index
    %c0_3 = arith.constant 0 : index
    %9 = vector.load %arg2[%c0, %c0_3] : memref<16x128xf32, #tpu.memory_space<vmem>>, vector<16x128xf32>
    %10 = arith.mulf %9, %9 : vector<16x128xf32>
    %cst = arith.constant dense<0.000000e+00> : vector<16xf32>
    %11 = vector.multi_reduction <add>, %10, %cst [1] : vector<16x128xf32> to vector<16xf32>
    %12 = vector.shape_cast %11 : vector<16xf32> to vector<16x1xf32>
    %cst_4 = arith.constant 1.000000e-24 : f32
    %13 = vector.broadcast %cst_4 : f32 to vector<16x1xf32>
    %14 = arith.maximumf %12, %13 : vector<16x1xf32>
    %15 = math.rsqrt %14 : vector<16x1xf32>
    %16 = vector.broadcast %15 : vector<16x1xf32> to vector<16x128xf32>
    %17 = arith.mulf %9, %16 : vector<16x128xf32>
    %c0_5 = arith.constant 0 : index
    %c0_6 = arith.constant 0 : index
    %18 = vector.load %arg3[%c0_5, %c0_6] : memref<16x128xf32, #tpu.memory_space<vmem>>, vector<16x128xf32>
    %19 = arith.mulf %18, %18 : vector<16x128xf32>
    %cst_7 = arith.constant dense<0.000000e+00> : vector<16xf32>
    %20 = vector.multi_reduction <add>, %19, %cst_7 [1] : vector<16x128xf32> to vector<16xf32>
    %21 = vector.shape_cast %20 : vector<16xf32> to vector<16x1xf32>
    %cst_8 = arith.constant 1.000000e-24 : f32
    %22 = vector.broadcast %cst_8 : f32 to vector<16x1xf32>
    %23 = arith.maximumf %21, %22 : vector<16x1xf32>
    %24 = math.rsqrt %23 : vector<16x1xf32>
    %25 = vector.broadcast %24 : vector<16x1xf32> to vector<16x128xf32>
    %26 = arith.mulf %18, %25 : vector<16x128xf32>
    %c0_9 = arith.constant 0 : index
    %c0_10 = arith.constant 0 : index
    %27 = vector.load %arg4[%c0_9, %c0_10] : memref<16x128xf32, #tpu.memory_space<vmem>>, vector<16x128xf32>
    %28 = arith.mulf %27, %27 : vector<16x128xf32>
    %cst_11 = arith.constant dense<0.000000e+00> : vector<16xf32>
    %29 = vector.multi_reduction <add>, %28, %cst_11 [1] : vector<16x128xf32> to vector<16xf32>
    %30 = vector.shape_cast %29 : vector<16xf32> to vector<16x1xf32>
    %cst_12 = arith.constant 1.000000e-24 : f32
    %31 = vector.broadcast %cst_12 : f32 to vector<16x1xf32>
    %32 = arith.maximumf %30, %31 : vector<16x1xf32>
    %33 = math.rsqrt %32 : vector<16x1xf32>
    %34 = vector.broadcast %33 : vector<16x1xf32> to vector<16x128xf32>
    %35 = arith.mulf %27, %34 : vector<16x128xf32>
    %c0_13 = arith.constant 0 : index
    %c0_14 = arith.constant 0 : index
    %36 = vector.load %arg5[%c0_13, %c0_14] : memref<16x128xf32, #tpu.memory_space<vmem>>, vector<16x128xf32>
    %37 = arith.mulf %36, %36 : vector<16x128xf32>
    %cst_15 = arith.constant dense<0.000000e+00> : vector<16xf32>
    %38 = vector.multi_reduction <add>, %37, %cst_15 [1] : vector<16x128xf32> to vector<16xf32>
    %39 = vector.shape_cast %38 : vector<16xf32> to vector<16x1xf32>
    %cst_16 = arith.constant 1.000000e-24 : f32
    %40 = vector.broadcast %cst_16 : f32 to vector<16x1xf32>
    %41 = arith.maximumf %39, %40 : vector<16x1xf32>
    %42 = math.rsqrt %41 : vector<16x1xf32>
    %43 = vector.broadcast %42 : vector<16x1xf32> to vector<16x128xf32>
    %44 = arith.mulf %36, %43 : vector<16x128xf32>
    %c0_i32_17 = arith.constant 0 : i32
    %45 = arith.cmpi eq, %arg1, %c0_i32_17 : i32
    %46 = arith.extui %45 : i1 to i32
    %cst_18 = arith.constant 2.000000e+00 : f32
    %c0_i32_19 = arith.constant 0 : i32
    %47 = arith.cmpi ne, %46, %c0_i32_19 : i32
    scf.if %47 {
      %89 = arith.mulf %17, %26 : vector<16x128xf32>
      %cst_39 = arith.constant dense<0.000000e+00> : vector<16xf32>
      %90 = vector.multi_reduction <add>, %89, %cst_39 [1] : vector<16x128xf32> to vector<16xf32>
      %91 = vector.shape_cast %90 : vector<16xf32> to vector<16x1xf32>
      %92 = vector.broadcast %cst_18 : f32 to vector<16x1xf32>
      %93 = arith.mulf %91, %92 : vector<16x1xf32>
      %94 = arith.index_cast %1 : i32 to index
      %c0_40 = arith.constant 0 : index
      %95 = vector.load %arg9[%94, %c0_40] : memref<32x1xf32, #tpu.memory_space<vmem>>, vector<16x1xf32>
      tpu.vector_store %arg9[%94, %c0_40], %93 {strides = array<i32>} : memref<32x1xf32, #tpu.memory_space<vmem>>, vector<16x1xf32>,
      %96 = arith.index_cast %1 : i32 to index
      %c0_41 = arith.constant 0 : index
      %97 = vector.load %arg7[%96, %c0_41] : memref<32x1xf32, #tpu.memory_space<vmem>>, vector<16x1xf32>
      %98 = arith.mulf %17, %17 : vector<16x128xf32>
      %cst_42 = arith.constant dense<0.000000e+00> : vector<16xf32>
      %99 = vector.multi_reduction <add>, %98, %cst_42 [1] : vector<16x128xf32> to vector<16xf32>
      %100 = vector.shape_cast %99 : vector<16xf32> to vector<16x1xf32>
      %101 = vector.broadcast %cst_18 : f32 to vector<16x1xf32>
      %102 = arith.mulf %100, %101 : vector<16x1xf32>
      %103 = math.exp %102 : vector<16x1xf32>
      %cst_43 = arith.constant 0.000000e+00 : f32
      %104 = vector.broadcast %cst_43 : f32 to vector<16x1xf32>
      %105 = arith.subf %104, %103 : vector<16x1xf32>
      %106 = arith.addf %97, %105 : vector<16x1xf32>
      %107 = arith.index_cast %1 : i32 to index
      %c0_44 = arith.constant 0 : index
      %108 = vector.load %arg7[%107, %c0_44] : memref<32x1xf32, #tpu.memory_space<vmem>>, vector<16x1xf32>
      tpu.vector_store %arg7[%107, %c0_44], %106 {strides = array<i32>} : memref<32x1xf32, #tpu.memory_space<vmem>>, vector<16x1xf32>,
      %109 = arith.index_cast %1 : i32 to index
      %c0_45 = arith.constant 0 : index
      %110 = vector.load %arg8[%109, %c0_45] : memref<32x1xf32, #tpu.memory_space<vmem>>, vector<16x1xf32>
      %111 = arith.mulf %26, %26 : vector<16x128xf32>
      %cst_46 = arith.constant dense<0.000000e+00> : vector<16xf32>
      %112 = vector.multi_reduction <add>, %111, %cst_46 [1] : vector<16x128xf32> to vector<16xf32>
      %113 = vector.shape_cast %112 : vector<16xf32> to vector<16x1xf32>
      %114 = vector.broadcast %cst_18 : f32 to vector<16x1xf32>
      %115 = arith.mulf %113, %114 : vector<16x1xf32>
      %116 = math.exp %115 : vector<16x1xf32>
      %cst_47 = arith.constant 0.000000e+00 : f32
      %117 = vector.broadcast %cst_47 : f32 to vector<16x1xf32>
      %118 = arith.subf %117, %116 : vector<16x1xf32>
      %119 = arith.addf %110, %118 : vector<16x1xf32>
      %120 = arith.index_cast %1 : i32 to index
      %c0_48 = arith.constant 0 : index
      %121 = vector.load %arg8[%120, %c0_48] : memref<32x1xf32, #tpu.memory_space<vmem>>, vector<16x1xf32>
      tpu.vector_store %arg8[%120, %c0_48], %119 {strides = array<i32>} : memref<32x1xf32, #tpu.memory_space<vmem>>, vector<16x1xf32>,
    } else {
    }
    %cst_20 = arith.constant dense<0.000000e+00> : vector<16x16xf32>
    %48 = tpu.matmul %17, %35, %cst_20 {dimension_numbers = #tpu.dot_dimension_numbers<[1], [1], [0], [0], [0, 0, 1, 0], [], []>} : vector<16x128xf32>, vector<16x128xf32>, vector<16x16xf32> -> vector<16x16xf32>
    %cst_21 = arith.constant 2.000000e+00 : f32
    %49 = vector.broadcast %cst_21 : f32 to vector<16x16xf32>
    %50 = arith.mulf %48, %49 : vector<16x16xf32>
    %51 = math.exp %50 : vector<16x16xf32>
    %cst_22 = arith.constant dense<0.000000e+00> : vector<16x16xf32>
    %52 = tpu.matmul %17, %44, %cst_22 {dimension_numbers = #tpu.dot_dimension_numbers<[1], [1], [0], [0], [0, 0, 1, 0], [], []>} : vector<16x128xf32>, vector<16x128xf32>, vector<16x16xf32> -> vector<16x16xf32>
    %cst_23 = arith.constant 2.000000e+00 : f32
    %53 = vector.broadcast %cst_23 : f32 to vector<16x16xf32>
    %54 = arith.mulf %52, %53 : vector<16x16xf32>
    %55 = math.exp %54 : vector<16x16xf32>
    %cst_24 = arith.constant dense<0.000000e+00> : vector<16x16xf32>
    %56 = tpu.matmul %26, %44, %cst_24 {dimension_numbers = #tpu.dot_dimension_numbers<[1], [1], [0], [0], [0, 0, 1, 0], [], []>} : vector<16x128xf32>, vector<16x128xf32>, vector<16x16xf32> -> vector<16x16xf32>
    %cst_25 = arith.constant 2.000000e+00 : f32
    %57 = vector.broadcast %cst_25 : f32 to vector<16x16xf32>
    %58 = arith.mulf %56, %57 : vector<16x16xf32>
    %59 = math.exp %58 : vector<16x16xf32>
    %60 = arith.index_cast %1 : i32 to index
    %c0_26 = arith.constant 0 : index
    %61 = vector.load %arg7[%60, %c0_26] : memref<32x1xf32, #tpu.memory_space<vmem>>, vector<16x1xf32>
    %cst_27 = arith.constant dense<0.000000e+00> : vector<16xf32>
    %62 = vector.multi_reduction <add>, %51, %cst_27 [1] : vector<16x16xf32> to vector<16xf32>
    %63 = vector.shape_cast %62 : vector<16xf32> to vector<16x1xf32>
    %cst_28 = arith.constant dense<0.000000e+00> : vector<16xf32>
    %64 = vector.multi_reduction <add>, %55, %cst_28 [1] : vector<16x16xf32> to vector<16xf32>
    %65 = vector.shape_cast %64 : vector<16xf32> to vector<16x1xf32>
    %66 = arith.addf %63, %65 : vector<16x1xf32>
    %67 = arith.addf %61, %66 : vector<16x1xf32>
    %68 = arith.index_cast %1 : i32 to index
    %c0_29 = arith.constant 0 : index
    %69 = vector.load %arg7[%68, %c0_29] : memref<32x1xf32, #tpu.memory_space<vmem>>, vector<16x1xf32>
    tpu.vector_store %arg7[%68, %c0_29], %67 {strides = array<i32>} : memref<32x1xf32, #tpu.memory_space<vmem>>, vector<16x1xf32>,
    %70 = arith.index_cast %1 : i32 to index
    %c0_30 = arith.constant 0 : index
    %71 = vector.load %arg8[%70, %c0_30] : memref<32x1xf32, #tpu.memory_space<vmem>>, vector<16x1xf32>
    %cst_31 = arith.constant dense<0.000000e+00> : vector<16xf32>
    %72 = vector.multi_reduction <add>, %59, %cst_31 [1] : vector<16x16xf32> to vector<16xf32>
    %73 = vector.shape_cast %72 : vector<16xf32> to vector<16x1xf32>
    %74 = arith.addf %71, %73 : vector<16x1xf32>
    %75 = arith.index_cast %1 : i32 to index
    %c0_32 = arith.constant 0 : index
    %76 = vector.load %arg8[%75, %c0_32] : memref<32x1xf32, #tpu.memory_space<vmem>>, vector<16x1xf32>
    tpu.vector_store %arg8[%75, %c0_32], %74 {strides = array<i32>} : memref<32x1xf32, #tpu.memory_space<vmem>>, vector<16x1xf32>,
    %cst_33 = arith.constant 1.000000e+00 : f32
    %77 = vector.broadcast %cst_33 : f32 to vector<16x1xf32>
    %cst_34 = arith.constant dense<0.000000e+00> : vector<16x1xf32>
    %78 = tpu.matmul %55, %77, %cst_34 {dimension_numbers = #tpu.dot_dimension_numbers<[0], [0], [1], [1], [0, 1, 1, 1], [], []>} : vector<16x16xf32>, vector<16x1xf32>, vector<16x1xf32> -> vector<16x1xf32>
    %79 = arith.index_cast %3 : i32 to index
    %c0_35 = arith.constant 0 : index
    %80 = vector.load %arg8[%79, %c0_35] : memref<32x1xf32, #tpu.memory_space<vmem>>, vector<16x1xf32>
    %81 = arith.addf %80, %78 : vector<16x1xf32>
    %82 = arith.index_cast %3 : i32 to index
    %c0_36 = arith.constant 0 : index
    %83 = vector.load %arg8[%82, %c0_36] : memref<32x1xf32, #tpu.memory_space<vmem>>, vector<16x1xf32>
    tpu.vector_store %arg8[%82, %c0_36], %81 {strides = array<i32>} : memref<32x1xf32, #tpu.memory_space<vmem>>, vector<16x1xf32>,
    %c1_i32 = arith.constant 1 : i32
    %84 = arith.cmpi eq, %arg0, %c1_i32 : i32
    %c1_i32_37 = arith.constant 1 : i32
    %85 = arith.cmpi eq, %arg1, %c1_i32_37 : i32
    %86 = arith.andi %84, %85 : i1
    %87 = arith.extui %86 : i1 to i32
    %c0_i32_38 = arith.constant 0 : i32
    %88 = arith.cmpi ne, %87, %c0_i32_38 : i32
    scf.if %88 {
      %c0_39 = arith.constant 0 : index
      %c0_40 = arith.constant 0 : index
      %89 = vector.load %arg7[%c0_39, %c0_40] : memref<32x1xf32, #tpu.memory_space<vmem>>, vector<32x1xf32>
      %c0_41 = arith.constant 0 : index
      %c0_42 = arith.constant 0 : index
      %90 = vector.load %arg8[%c0_41, %c0_42] : memref<32x1xf32, #tpu.memory_space<vmem>>, vector<32x1xf32>
      %c0_43 = arith.constant 0 : index
      %c0_44 = arith.constant 0 : index
      %91 = vector.load %arg9[%c0_43, %c0_44] : memref<32x1xf32, #tpu.memory_space<vmem>>, vector<32x1xf32>
      %92 = math.log %89 : vector<32x1xf32>
      %93 = arith.subf %92, %91 : vector<32x1xf32>
      %94 = math.log %90 : vector<32x1xf32>
      %95 = arith.subf %94, %91 : vector<32x1xf32>
      %96 = arith.addf %93, %95 : vector<32x1xf32>
      %97 = vector.shape_cast %96 : vector<32x1xf32> to vector<1x32x1xf32>
      %cst_45 = arith.constant dense<0.000000e+00> : vector<1xf32>
      %98 = vector.multi_reduction <add>, %97, %cst_45 [1, 2] : vector<1x32x1xf32> to vector<1xf32>
      %99 = vector.shape_cast %98 : vector<1xf32> to vector<1x1x1xf32>
      %100 = vector.extract %99[0, 0, 0] : f32 from vector<1x1x1xf32>
      %cst_46 = arith.constant 1.562500e-02 : f32
      %101 = arith.mulf %100, %cst_46 : f32
      %c0_47 = arith.constant 0 : index
      %c0_48 = arith.constant 0 : index
      %102 = memref.load %arg6[%c0_47, %c0_48] : memref<1x1xf32, #tpu.memory_space<smem>>
      memref.store %101, %arg6[%c0_47, %c0_48] : memref<1x1xf32, #tpu.memory_space<smem>>
    } else {
    }
    return
  }
  func.func @transform_0(%arg0: i32, %arg1: i32) -> (i32, i32) {
    %c0_i32 = arith.constant 0 : i32
    %c0_i32_0 = arith.constant 0 : i32
    return %arg0, %c0_i32 : i32, i32
  }
  func.func @transform_1(%arg0: i32, %arg1: i32) -> (i32, i32) {
    %c0_i32 = arith.constant 0 : i32
    %c0_i32_0 = arith.constant 0 : i32
    return %arg0, %c0_i32 : i32, i32
  }
  func.func @transform_2(%arg0: i32, %arg1: i32) -> (i32, i32) {
    %c0_i32 = arith.constant 0 : i32
    %c0_i32_0 = arith.constant 0 : i32
    return %arg1, %c0_i32 : i32, i32
  }
  func.func @transform_3(%arg0: i32, %arg1: i32) -> (i32, i32) {
    %c0_i32 = arith.constant 0 : i32
    %c0_i32_0 = arith.constant 0 : i32
    return %arg1, %c0_i32 : i32, i32
  }
  func.func @transform_4(%arg0: i32, %arg1: i32) -> (i32, i32) {
    %c0_i32 = arith.constant 0 : i32
    %c0_i32_0 = arith.constant 0 : i32
    %c0_i32_1 = arith.constant 0 : i32
    return %c0_i32, %c0_i32_0 : i32, i32
  }
}

</mosaic_0001>

<llo_original>
// kernel: tpu_custom_call.1
$region0: #{tpu_custom_call.1}
  #allocation0 [shape = 'u32[]', space=smem, size = 0x4, offset = 0x4, fixed_abs, tag = 'smem constant byte address 0x4 - core index']
  #allocation1 [shape = 'u32[144,128]{1,0:T(1,128)}', space=vmem, size = 0x12000, scoped, tag = 'internal scratch']
  #allocation2 [shape = 'f32[32,1]{1,0:T(8,128)}', space=vmem, size = 0x4000, scoped, tag = 'scratch operand']
  #allocation3 [shape = 'f32[32,1]{1,0:T(8,128)}', space=vmem, size = 0x4000, scoped, tag = 'scratch operand']
  #allocation4 [shape = 'f32[32,1]{1,0:T(8,128)}', space=vmem, size = 0x4000, scoped, tag = 'scratch operand']
  %s0 = inlined_call_operand.hbm [shape: f32[32,128], index: 0, kind: input, shape index: {}]
  %s1 = inlined_call_operand.hbm [shape: f32[32,128], index: 1, kind: input, shape index: {}]
  %s2 = inlined_call_operand.hbm [shape: f32[32,128], index: 2, kind: input, shape index: {}]
  %s3 = inlined_call_operand.hbm [shape: f32[32,128], index: 3, kind: input, shape index: {}]
  %s4 = inlined_call_operand.hbm [shape: f32[1,1], index: 4, kind: output, shape index: {}]
  %s5 = sld [smem:[#allocation0]]
  $region77: #{tpu_custom_call.1} parent=0
    _
  %s7 = ssub.s32 1, %s5
  %s8 = scalar_select 0, %s7, %s5
  $region1: #{tpu_custom_call.1} parent=0
    #allocation5 [shape = 'u8[16384]{0}', space=vmem, size = 0x4000, scoped, tag = 'input window, operand 0']
    #allocation6 [shape = 's32[2]{0}', space=sflag, size = 0x8, scoped, tag = 'scoped memory for tpu_custom_call.1']
    #allocation7 [shape = 's32[2]{0}', space=sflag, size = 0x8, scoped, tag = 'scoped memory for tpu_custom_call.1']
    #allocation8 [shape = 'u8[16384]{0}', space=vmem, size = 0x4000, scoped, tag = 'input window, operand 1']
    #allocation9 [shape = 's32[2]{0}', space=sflag, size = 0x8, scoped, tag = 'scoped memory for tpu_custom_call.1']
    #allocation10 [shape = 'u8[16384]{0}', space=vmem, size = 0x4000, scoped, tag = 'input window, operand 2']
    #allocation11 [shape = 'u8[16384]{0}', space=vmem, size = 0x4000, scoped, tag = 'input window, operand 3']
    #allocation12 [shape = 's32[2]{0}', space=sflag, size = 0x8, scoped, tag = 'scoped memory for tpu_custom_call.1']
    #allocation13 [shape = 'u8[512]{0}', space=smem, size = 0x200, scoped, tag = 'output window, operand 0, single buffered']
    %9 = vsyncpa [#allocation6], 0
    %s10 = scalar_lea.sflag [#allocation6], 1
    %11 = vsyncpa %s10, 0
    %12 = vsyncpa [#allocation9], 0
    %s13 = scalar_lea.sflag [#allocation9], 1
    %14 = vsyncpa %s13, 0
    %15 = vsyncpa [#allocation12], 0
    %s16 = scalar_lea.sflag [#allocation12], 1
    %17 = vsyncpa %s16, 0
    %18 = vsyncpa [#allocation7], 0
    loop: start=0, step=1, limit=6
    $region2: #{tpu_custom_call.1} parent=1 // loop_pre_header
      _
    $region3: #{tpu_custom_call.1} parent=1 // loop_header
      %s20 = sphi 0, %s24
      %p21 = scmp.ge.s32.totalorder %s20, 6
      %s27 = sphi 0, %s39
      %s28 = sphi 0, %s35
      %s29 = sphi 0, %s27
      %s30 = sphi 0, %s28
      %s31 = sphi 0, %s29
      %s32 = sphi 0, %s30
      %s42 = sphi 0, %s44
      %s45 = sphi 0, %s42
      %s46 = sphi 0, %s45
      %s62 = sphi 0, %s46
      %s68 = sphi 0, %s70
      %s71 = sphi 0, %s68
      %s72 = sphi 0, %s71
      %s88 = sphi 0, %s72
      %s94 = sphi 0, %s96
      %s97 = sphi 0, %s94
      %s98 = sphi 0, %s97
      %s114 = sphi 0, %s98
      %s120 = sphi 0, %s122
      %s123 = sphi 0, %s120
      %s124 = sphi 0, %s123
      %s140 = sphi 0, %s124
      %s144 = sphi 0, %s144
      %s146 = sphi 0, %s144
      %s147 = sphi 0, %s146
      %s161 = sphi 0, %s147
    $region4: #{tpu_custom_call.1} parent=1 // loop_header_branch
      %23 = sbr.rel (%p21) target = $region8
    $region5: #{tpu_custom_call.1} parent=1 // loop_body
      %s25 = ssub.s32 %s20, 1
      %s26 = ssub.s32 %s20, 2
      %s33 = sadd.s32 1, %s28
      %p34 = scmp.ge.s32.totalorder %s33, 2
      %s35 = scalar_select %p34, 0, %s33
      %s36 = sadd.s32 1, %s27
      %s37 = scalar_select %p34, %s36, %s27
      %p38 = scmp.ge.s32.totalorder %s37, 2
      %s39 = scalar_select %p38, 0, %s37
      %s40 = ssub.s32 %s27, %s39
      %p41 = scmp.eq.s32.totalorder %s40, 0
      %s43 = sadd.s32 %s42, 1
      %s44 = scalar_select %p41, %s42, %s43
      %p47 = pneg %p41
      %p48 = scmp.eq.s32.totalorder %s20, 3
      %p49 = por %p47, %p48
      %p50 = scmp.ne.s32.totalorder %s42, %s45
      %p51 = scmp.eq.s32.totalorder %s20, 0
      %p52 = por %p50, %p51
      %p53 = scmp.ne.s32.totalorder %s42, %s45
      %p54 = scmp.eq.s32.totalorder %s25, 3
      %p55 = por %p53, %p54
      %p56 = scmp.ne.s32.totalorder %s45, %s46
      %p57 = scmp.eq.s32.totalorder %s25, 0
      %p58 = por %p56, %p57
      %p59 = scmp.ne.s32.totalorder %s45, %s46
      %p60 = scmp.eq.s32.totalorder %s26, 3
      %p61 = por %p59, %p60
      %p63 = scmp.ne.s32.totalorder %s46, %s62
      %p64 = scmp.eq.s32.totalorder %s26, 0
      %p65 = por %p63, %p64
      %s66 = ssub.s32 %s27, %s39
      %p67 = scmp.eq.s32.totalorder %s66, 0
      %s69 = sadd.s32 %s68, 1
      %s70 = scalar_select %p67, %s68, %s69
      %p73 = pneg %p67
      %p74 = scmp.eq.s32.totalorder %s20, 3
      %p75 = por %p73, %p74
      %p76 = scmp.ne.s32.totalorder %s68, %s71
      %p77 = scmp.eq.s32.totalorder %s20, 0
      %p78 = por %p76, %p77
      %p79 = scmp.ne.s32.totalorder %s68, %s71
      %p80 = scmp.eq.s32.totalorder %s25, 3
      %p81 = por %p79, %p80
      %p82 = scmp.ne.s32.totalorder %s71, %s72
      %p83 = scmp.eq.s32.totalorder %s25, 0
      %p84 = por %p82, %p83
      %p85 = scmp.ne.s32.totalorder %s71, %s72
      %p86 = scmp.eq.s32.totalorder %s26, 3
      %p87 = por %p85, %p86
      %p89 = scmp.ne.s32.totalorder %s72, %s88
      %p90 = scmp.eq.s32.totalorder %s26, 0
      %p91 = por %p89, %p90
      %s92 = ssub.s32 %s28, %s35
      %p93 = scmp.eq.s32.totalorder %s92, 0
      %s95 = sadd.s32 %s94, 1
      %s96 = scalar_select %p93, %s94, %s95
      %p99 = pneg %p93
      %p100 = scmp.eq.s32.totalorder %s20, 3
      %p101 = por %p99, %p100
      %p102 = scmp.ne.s32.totalorder %s94, %s97
      %p103 = scmp.eq.s32.totalorder %s20, 0
      %p104 = por %p102, %p103
      %p105 = scmp.ne.s32.totalorder %s94, %s97
      %p106 = scmp.eq.s32.totalorder %s25, 3
      %p107 = por %p105, %p106
      %p108 = scmp.ne.s32.totalorder %s97, %s98
      %p109 = scmp.eq.s32.totalorder %s25, 0
      %p110 = por %p108, %p109
      %p111 = scmp.ne.s32.totalorder %s97, %s98
      %p112 = scmp.eq.s32.totalorder %s26, 3
      %p113 = por %p111, %p112
      %p115 = scmp.ne.s32.totalorder %s98, %s114
      %p116 = scmp.eq.s32.totalorder %s26, 0
      %p117 = por %p115, %p116
      %s118 = ssub.s32 %s28, %s35
      %p119 = scmp.eq.s32.totalorder %s118, 0
      %s121 = sadd.s32 %s120, 1
      %s122 = scalar_select %p119, %s120, %s121
      %p125 = pneg %p119
      %p126 = scmp.eq.s32.totalorder %s20, 3
      %p127 = por %p125, %p126
      %p128 = scmp.ne.s32.totalorder %s120, %s123
      %p129 = scmp.eq.s32.totalorder %s20, 0
      %p130 = por %p128, %p129
      %p131 = scmp.ne.s32.totalorder %s120, %s123
      %p132 = scmp.eq.s32.totalorder %s25, 3
      %p133 = por %p131, %p132
      %p134 = scmp.ne.s32.totalorder %s123, %s124
      %p135 = scmp.eq.s32.totalorder %s25, 0
      %p136 = por %p134, %p135
      %p137 = scmp.ne.s32.totalorder %s123, %s124
      %p138 = scmp.eq.s32.totalorder %s26, 3
      %p139 = por %p137, %p138
      %p141 = scmp.ne.s32.totalorder %s124, %s140
      %p142 = scmp.eq.s32.totalorder %s26, 0
      %p143 = por %p141, %p142
      %s145 = sadd.s32 %s144, 1
      %p148 = scmp.eq.s32.totalorder %s20, 3
      %p149 = scmp.ne.s32.totalorder %s144, %s146
      %p150 = scmp.eq.s32.totalorder %s20, 0
      %p151 = por %p149, %p150
      %p152 = scmp.ne.s32.totalorder %s144, %s146
      %p153 = scmp.eq.s32.totalorder %s25, 3
      %p154 = por %p152, %p153
      %p155 = scmp.ne.s32.totalorder %s146, %s147
      %p156 = scmp.eq.s32.totalorder %s25, 0
      %p157 = por %p155, %p156
      %p158 = scmp.ne.s32.totalorder %s146, %s147
      %p159 = scmp.eq.s32.totalorder %s26, 3
      %p160 = por %p158, %p159
      %p162 = scmp.ne.s32.totalorder %s147, %s161
      %p163 = scmp.eq.s32.totalorder %s26, 0
      %p164 = por %p162, %p163
      %p165 = scmp.le.s32.totalorder 1, %s20
      %p166 = scmp.lt.s32.totalorder %s20, 5
      %p167 = pnand %p165, %p166
      %p168 = pneg %p167
      // Predicated region
      $region9: #{tpu_custom_call.1} parent=5 // pred_check
        _
      $region10: #{tpu_custom_call.1} parent=5 // pred_check_branch
        %170 = sbr.rel (%p167) target = $region12
      $region11: #{tpu_custom_call.1} parent=5 // pred_region
        %s171 = ssub.s32 %s20, 1
      $region12: #{tpu_custom_call.1} parent=5 // pred_fallthru
        _
      %p172 = scmp.lt.s32.totalorder %s20, 4
      // Predicated region
      $region13: #{tpu_custom_call.1} parent=5 // pred_check
        %p173 = pneg %p172
      $region14: #{tpu_custom_call.1} parent=5 // pred_check_branch
        %175 = sbr.rel (%p173) target = $region16
      $region15: #{tpu_custom_call.1} parent=5 // pred_region
        // Predicated region
        $region17: #{tpu_custom_call.1} parent=15 // pred_check
          %p176 = pneg %p52
        $region18: #{tpu_custom_call.1} parent=15 // pred_check_branch
          %178 = sbr.rel (%p176) target = $region20
        $region19: #{tpu_custom_call.1} parent=15 // pred_region
          %s179 = sand.u32 %s42, 1
          %s180 = scalar_lea.sflag [#allocation6], %s179
          %s181 = sand.u32 %s42, 1
          %s182 = smul.addr %s181, 16
          %s183 = scalar_lea.vmem [#allocation5], %s182
          %s184 = smul.u32 2, %s27
          %s186 = ssub.s32 256, 256
          %187 = vsyncadd %s180, %s186
          %s188 = smul.addr %s184, 128
          %s189 = scalar_lea.hbm %s0, %s188
          %s190 = sshll.u32 %s183, 4
          %s191 = int_to_ptr.vmem [resolvable:$true] %s190
          %196 = dma.hbm_to_vmem [thread:$0]  %s189, 256, %s191, %s180, 128, 128, 8
        $region20: #{tpu_custom_call.1} parent=15 // pred_fallthru
          _
        // Predicated region
        $region21: #{tpu_custom_call.1} parent=15 // pred_check
          %p197 = pneg %p78
        $region22: #{tpu_custom_call.1} parent=15 // pred_check_branch
          %199 = sbr.rel (%p197) target = $region24
        $region23: #{tpu_custom_call.1} parent=15 // pred_region
          %s200 = sand.u32 %s20, 1
          %s201 = scalar_lea.sflag [#allocation9], %s200
          %s202 = sand.u32 %s68, 1
          %s203 = smul.addr %s202, 16
          %s204 = scalar_lea.vmem [#allocation8], %s203
          %s205 = smul.u32 2, %s27
          %s207 = ssub.s32 256, 256
          %208 = vsyncadd %s201, %s207
          %s209 = smul.addr %s205, 128
          %s210 = scalar_lea.hbm %s1, %s209
          %s211 = sshll.u32 %s204, 4
          %s212 = int_to_ptr.vmem [resolvable:$true] %s211
          %217 = dma.hbm_to_vmem [thread:$0]  %s210, 256, %s212, %s201, 128, 128, 8
        $region24: #{tpu_custom_call.1} parent=15 // pred_fallthru
          _
        // Predicated region
        $region25: #{tpu_custom_call.1} parent=15 // pred_check
          %p218 = pneg %p104
        $region26: #{tpu_custom_call.1} parent=15 // pred_check_branch
          %220 = sbr.rel (%p218) target = $region28
        $region27: #{tpu_custom_call.1} parent=15 // pred_region
          %s221 = sand.u32 %s20, 1
          %s222 = scalar_lea.sflag [#allocation9], %s221
          %s223 = sand.u32 %s94, 1
          %s224 = smul.addr %s223, 16
          %s225 = scalar_lea.vmem [#allocation10], %s224
          %s226 = smul.u32 2, %s28
          %s228 = ssub.s32 256, 256
          %229 = vsyncadd %s222, %s228
          %s230 = smul.addr %s226, 128
          %s231 = scalar_lea.hbm %s2, %s230
          %s232 = sshll.u32 %s225, 4
          %s233 = int_to_ptr.vmem [resolvable:$true] %s232
          %238 = dma.hbm_to_vmem [thread:$0]  %s231, 256, %s233, %s222, 128, 128, 8
        $region28: #{tpu_custom_call.1} parent=15 // pred_fallthru
          _
        // Predicated region
        $region29: #{tpu_custom_call.1} parent=15 // pred_check
          %p239 = pneg %p130
        $region30: #{tpu_custom_call.1} parent=15 // pred_check_branch
          %241 = sbr.rel (%p239) target = $region32
        $region31: #{tpu_custom_call.1} parent=15 // pred_region
          %s242 = sand.u32 %s120, 1
          %s243 = scalar_lea.sflag [#allocation12], %s242
          %s244 = sand.u32 %s120, 1
          %s245 = smul.addr %s244, 16
          %s246 = scalar_lea.vmem [#allocation11], %s245
          %s247 = smul.u32 2, %s28
          %s249 = ssub.s32 256, 256
          %250 = vsyncadd %s243, %s249
          %s251 = smul.addr %s247, 128
          %s252 = scalar_lea.hbm %s3, %s251
          %s253 = sshll.u32 %s246, 4
          %s254 = int_to_ptr.vmem [resolvable:$true] %s253
          %259 = dma.hbm_to_vmem [thread:$0]  %s252, 256, %s254, %s243, 128, 128, 8
        $region32: #{tpu_custom_call.1} parent=15 // pred_fallthru
          _
      $region16: #{tpu_custom_call.1} parent=5 // pred_fallthru
        _
      %p260 = scmp.le.s32.totalorder 1, %s20
      %p261 = scmp.lt.s32.totalorder %s20, 5
      %p262 = pnand %p260, %p261
      %p263 = pneg %p262
      // Predicated region
      $region33: #{tpu_custom_call.1} parent=5 // pred_check
        _
      $region34: #{tpu_custom_call.1} parent=5 // pred_check_branch
        %265 = sbr.rel (%p262) target = $region36
      $region35: #{tpu_custom_call.1} parent=5 // pred_region
        %s266 = ssub.s32 %s20, 1
        %s267 = sand.u32 %s45, 1
        %s268 = scalar_lea.sflag [#allocation6], %s267
        %s269 = sand.u32 %s45, 1
        %s270 = smul.addr %s269, 16
        %s271 = scalar_lea.vmem [#allocation5], %s270
        // Predicated region
        $region37: #{tpu_custom_call.1} parent=35 // pred_check
          %p272 = pneg %p58
        $region38: #{tpu_custom_call.1} parent=35 // pred_check_branch
          %274 = sbr.rel (%p272) target = $region40
        $region39: #{tpu_custom_call.1} parent=35 // pred_region
          %275 = dma.done %s268, 256
        $region40: #{tpu_custom_call.1} parent=35 // pred_fallthru
          _
        %s276 = sand.u32 %s25, 1
        %s277 = scalar_lea.sflag [#allocation9], %s276
        %s278 = sand.u32 %s71, 1
        %s279 = smul.addr %s278, 16
        %s280 = scalar_lea.vmem [#allocation8], %s279
        // Predicated region
        $region41: #{tpu_custom_call.1} parent=35 // pred_check
          %p281 = pneg %p84
        $region42: #{tpu_custom_call.1} parent=35 // pred_check_branch
          %283 = sbr.rel (%p281) target = $region44
        $region43: #{tpu_custom_call.1} parent=35 // pred_region
          %284 = dma.done %s277, 256
        $region44: #{tpu_custom_call.1} parent=35 // pred_fallthru
          _
        %s285 = sand.u32 %s25, 1
        %s286 = scalar_lea.sflag [#allocation9], %s285
        %s287 = sand.u32 %s97, 1
        %s288 = smul.addr %s287, 16
        %s289 = scalar_lea.vmem [#allocation10], %s288
        // Predicated region
        $region45: #{tpu_custom_call.1} parent=35 // pred_check
          %p290 = pneg %p110
        $region46: #{tpu_custom_call.1} parent=35 // pred_check_branch
          %292 = sbr.rel (%p290) target = $region48
        $region47: #{tpu_custom_call.1} parent=35 // pred_region
          %293 = dma.done %s286, 256
        $region48: #{tpu_custom_call.1} parent=35 // pred_fallthru
          _
        %s294 = sand.u32 %s123, 1
        %s295 = scalar_lea.sflag [#allocation12], %s294
        %s296 = sand.u32 %s123, 1
        %s297 = smul.addr %s296, 16
        %s298 = scalar_lea.vmem [#allocation11], %s297
        // Predicated region
        $region49: #{tpu_custom_call.1} parent=35 // pred_check
          %p299 = pneg %p136
        $region50: #{tpu_custom_call.1} parent=35 // pred_check_branch
          %301 = sbr.rel (%p299) target = $region52
        $region51: #{tpu_custom_call.1} parent=35 // pred_region
          %302 = dma.done %s295, 256
        $region52: #{tpu_custom_call.1} parent=35 // pred_fallthru
          _
        %s303 = sand.u32 %s45, 1
        %s304 = scalar_lea.sflag [#allocation6], %s303
        %s305 = sand.u32 %s45, 1
        %s306 = smul.addr %s305, 16
        %s307 = scalar_lea.vmem [#allocation5], %s306
        %p308 = pneg %p58
        %p309 = pneg %p55
        %s310 = sand.u32 %s25, 1
        %s311 = scalar_lea.sflag [#allocation9], %s310
        %s312 = sand.u32 %s71, 1
        %s313 = smul.addr %s312, 16
        %s314 = scalar_lea.vmem [#allocation8], %s313
        %p315 = pneg %p84
        %p316 = pneg %p81
        %s317 = sand.u32 %s25, 1
        %s318 = scalar_lea.sflag [#allocation9], %s317
        %s319 = sand.u32 %s97, 1
        %s320 = smul.addr %s319, 16
        %s321 = scalar_lea.vmem [#allocation10], %s320
        %p322 = pneg %p110
        %p323 = pneg %p107
        %s324 = sand.u32 %s123, 1
        %s325 = scalar_lea.sflag [#allocation12], %s324
        %s326 = sand.u32 %s123, 1
        %s327 = smul.addr %s326, 16
        %s328 = scalar_lea.vmem [#allocation11], %s327
        %p329 = pneg %p136
        %p330 = pneg %p133
        %p331 = pneg %p157
        %p332 = pneg %p154
        %s333 = smul.u32 2, %s29
        %s334 = smul.u32 2, %s29
        %s335 = smul.u32 2, %s30
        %s336 = smul.u32 2, %s30
        %s337 = smul.u32 %s29, 16
        %s338 = smul.u32 %s30, 16
        %p339 = scmp.eq.s32.totalorder %s29, 0
        %p340 = scmp.eq.s32.totalorder %s30, 0
        %p341 = pnand %p339, %p340
        %p342 = pneg %p341
        // Predicated region
        $region53: #{tpu_custom_call.1} parent=35 // pred_check
          _
        $region54: #{tpu_custom_call.1} parent=35 // pred_check_branch
          %344 = sbr.rel (%p341) target = $region56
        $region55: #{tpu_custom_call.1} parent=35 // pred_region
          %vm345 = vcmask 7168
          %346 = vst.msk [vmem:[#allocation2] sm:$0xff] %vm345, 0.0
          %347 = vst.msk [vmem:[#allocation2 + $0x8] sm:$0xff] %vm345, 0.0
          %348 = vst.msk [vmem:[#allocation2 + $0x10] sm:$0xff] %vm345, 0.0
          %349 = vst.msk [vmem:[#allocation2 + $0x18] sm:$0xff] %vm345, 0.0
          %350 = vst.msk [vmem:[#allocation3] sm:$0xff] %vm345, 0.0
          %351 = vst.msk [vmem:[#allocation3 + $0x8] sm:$0xff] %vm345, 0.0
          %352 = vst.msk [vmem:[#allocation3 + $0x10] sm:$0xff] %vm345, 0.0
          %353 = vst.msk [vmem:[#allocation3 + $0x18] sm:$0xff] %vm345, 0.0
          %354 = vst.msk [vmem:[#allocation4] sm:$0xff] %vm345, 0.0
          %355 = vst.msk [vmem:[#allocation4 + $0x8] sm:$0xff] %vm345, 0.0
          %356 = vst.msk [vmem:[#allocation4 + $0x10] sm:$0xff] %vm345, 0.0
          %357 = vst.msk [vmem:[#allocation4 + $0x18] sm:$0xff] %vm345, 0.0
        $region56: #{tpu_custom_call.1} parent=35 // pred_fallthru
          _
        %v358 = vld [vmem:[%s271] sm:$0xff]
        %v359 = vld [vmem:[%s271 + $0x8] sm:$0xff]
        %v360 = vmul.f32 %v358, %v358
        %v361 = vmul.f32 %v359, %v359
        %362 = vadd.xlane.f32.xlu0 %v360
        %v363 = vpop.xlane.xlu0 %362
        %364 = vadd.xlane.f32.xlu0 %v361
        %v365 = vpop.xlane.xlu0 %364
        %v366 = vmax.f32 %v363, 1e-24
        %v367 = vmax.f32 %v365, 1e-24
        %v368 = vrsqrt.pop %v366
        %v369 = vrsqrt.pop %v367
        %v370 = vmul.f32 %v358, %v368
        %v371 = vmul.f32 %v359, %v369
        %v372 = vld [vmem:[%s280] sm:$0xff]
        %v373 = vld [vmem:[%s280 + $0x8] sm:$0xff]
        %v374 = vmul.f32 %v372, %v372
        %v375 = vmul.f32 %v373, %v373
        %376 = vadd.xlane.f32.xlu0 %v374
        %v377 = vpop.xlane.xlu0 %376
        %378 = vadd.xlane.f32.xlu0 %v375
        %v379 = vpop.xlane.xlu0 %378
        %v380 = vmax.f32 %v377, 1e-24
        %v381 = vmax.f32 %v379, 1e-24
        %v382 = vrsqrt.pop %v380
        %v383 = vrsqrt.pop %v381
        %v384 = vmul.f32 %v372, %v382
        %v385 = vmul.f32 %v373, %v383
        %v386 = vld [vmem:[%s289] sm:$0xff]
        %v387 = vld [vmem:[%s289 + $0x8] sm:$0xff]
        %v388 = vmul.f32 %v386, %v386
        %v389 = vmul.f32 %v387, %v387
        %390 = vadd.xlane.f32.xlu0 %v388
        %v391 = vpop.xlane.xlu0 %390
        %392 = vadd.xlane.f32.xlu0 %v389
        %v393 = vpop.xlane.xlu0 %392
        %v394 = vmax.f32 %v391, 1e-24
        %v395 = vmax.f32 %v393, 1e-24
        %v396 = vrsqrt.pop %v394
        %v397 = vrsqrt.pop %v395
        %v398 = vmul.f32 %v386, %v396
        %v399 = vmul.f32 %v387, %v397
        %v400 = vld [vmem:[%s298] sm:$0xff]
        %v401 = vld [vmem:[%s298 + $0x8] sm:$0xff]
        %v402 = vmul.f32 %v400, %v400
        %v403 = vmul.f32 %v401, %v401
        %404 = vadd.xlane.f32.xlu0 %v402
        %v405 = vpop.xlane.xlu0 %404
        %406 = vadd.xlane.f32.xlu0 %v403
        %v407 = vpop.xlane.xlu0 %406
        %v408 = vmax.f32 %v405, 1e-24
        %v409 = vmax.f32 %v407, 1e-24
        %v410 = vrsqrt.pop %v408
        %v411 = vrsqrt.pop %v409
        %v412 = vmul.f32 %v400, %v410
        %v413 = vmul.f32 %v401, %v411
        // Predicated region
        $region57: #{tpu_custom_call.1} parent=35 // pred_check
          %p414 = pneg %p340
        $region58: #{tpu_custom_call.1} parent=35 // pred_check_branch
          %416 = sbr.rel (%p414) target = $region60
        $region59: #{tpu_custom_call.1} parent=35 // pred_region
          %v417 = vmul.f32 %v370, %v384
          %v418 = vmul.f32 %v371, %v385
          %419 = vadd.xlane.f32.xlu0 %v417
          %v420 = vpop.xlane.xlu0 %419
          %421 = vadd.xlane.f32.xlu0 %v418
          %v422 = vpop.xlane.xlu0 %421
          %v423 = vmul.f32 %v420, 2.0
          %v424 = vmul.f32 %v422, 2.0
          %s425 = scalar_lea.vmem [#allocation4], %s337
          %vm426 = vcmask 7168
          %427 = vst.msk [vmem:[%s425] sm:$0xff] %vm426, %v423
          %428 = vst.msk [vmem:[%s425 + $0x8] sm:$0xff] %vm426, %v424
          %s429 = scalar_lea.vmem [#allocation2], %s337
          %v430 = vld [vmem:[%s429] sm:$0xff]
          %v431 = vld [vmem:[%s429 + $0x8] sm:$0xff]
          %v432 = vmul.f32 %v370, %v370
          %v433 = vmul.f32 %v371, %v371
          %434 = vadd.xlane.f32.xlu0 %v432
          %v435 = vpop.xlane.xlu0 %434
          %436 = vadd.xlane.f32.xlu0 %v433
          %v437 = vpop.xlane.xlu0 %436
          %v438 = vmul.f32 %v435, 2.0
          %v439 = vmul.f32 %v437, 2.0
          %v440 = vmul.f32 %v438, 1.442695
          %v441 = vpow.pop %v440
          %v442 = vmul.f32 %v439, 1.442695
          %v443 = vpow.pop %v442
          %v444 = vsub.f32 0.0, %v441
          %v445 = vsub.f32 0.0, %v443
          %v446 = vadd.f32 %v430, %v444
          %v447 = vadd.f32 %v431, %v445
          %448 = vst.msk [vmem:[%s429] sm:$0xff] %vm426, %v446
          %449 = vst.msk [vmem:[%s429 + $0x8] sm:$0xff] %vm426, %v447
          %s450 = scalar_lea.vmem [#allocation3], %s337
          %v451 = vld [vmem:[%s450] sm:$0xff]
          %v452 = vld [vmem:[%s450 + $0x8] sm:$0xff]
          %v453 = vmul.f32 %v384, %v384
          %v454 = vmul.f32 %v385, %v385
          %455 = vadd.xlane.f32.xlu0 %v453
          %v456 = vpop.xlane.xlu0 %455
          %457 = vadd.xlane.f32.xlu0 %v454
          %v458 = vpop.xlane.xlu0 %457
          %v459 = vmul.f32 %v456, 2.0
          %v460 = vmul.f32 %v458, 2.0
          %v461 = vmul.f32 %v459, 1.442695
          %v462 = vpow.pop %v461
          %v463 = vmul.f32 %v460, 1.442695
          %v464 = vpow.pop %v463
          %v465 = vsub.f32 0.0, %v462
          %v466 = vsub.f32 0.0, %v464
          %v467 = vadd.f32 %v451, %v465
          %v468 = vadd.f32 %v452, %v466
          %469 = vst.msk [vmem:[%s450] sm:$0xff] %vm426, %v467
          %470 = vst.msk [vmem:[%s450 + $0x8] sm:$0xff] %vm426, %v468
        $region60: #{tpu_custom_call.1} parent=35 // pred_fallthru
          _
        %471 = vmatprep.subr.mxu0 0.0
        %472 = vmatpush1.xpose.msra.mxu0 0.0
        %473 = vmatprep.subr.mxu0 0.0
        %474 = vmatpush1.xpose.msra.mxu0 0.0
        %475 = vmatprep.subr.mxu0 0.0
        %476 = vmatpush1.xpose.msra.mxu0 0.0
        %477 = vmatprep.subr.mxu0 0.0
        %478 = vmatpush1.xpose.msra.mxu0 0.0
        %479 = vmatprep.subr.mxu0 0.0
        %480 = vmatpush1.xpose.msra.mxu0 0.0
        %481 = vmatprep.subr.mxu0 0.0
        %482 = vmatpush1.xpose.msra.mxu0 0.0
        %483 = vmatprep.subr.mxu0 0.0
        %484 = vmatpush1.xpose.msra.mxu0 0.0
        %485 = vmatprep.subr.mxu0 0.0
        %486 = vmatpush1.xpose.msra.mxu0 0.0
        %487 = vmatprep.subr.mxu0 0.0
        %488 = vmatpush1.xpose.msra.mxu0 0.0
        %489 = vmatprep.subr.mxu0 0.0
        %490 = vmatpush1.xpose.msra.mxu0 0.0
        %491 = vmatprep.subr.mxu0 0.0
        %492 = vmatpush1.xpose.msra.mxu0 0.0
        %493 = vmatprep.subr.mxu0 0.0
        %494 = vmatpush1.xpose.msra.mxu0 0.0
        %495 = vmatprep.subr.mxu0 0.0
        %496 = vmatpush1.xpose.msra.mxu0 0.0
        %497 = vmatprep.subr.mxu0 0.0
        %498 = vmatpush1.xpose.msra.mxu0 0.0
        %499 = vmatprep.subr.mxu0 0.0
        %500 = vmatpush1.xpose.msra.mxu0 %v399
        %501 = vmatprep.subr.mxu0 0.0
        %502 = vmatpush1.xpose.msra.mxu0 %v398
        %503 = vmatprep.subr.mxu0 0.0
        %504 = vmatpush2.xpose.msra.mxu0 0.0
        %505 = vmatprep.subr.mxu0 0.0
        %506 = vmatpush2.xpose.msra.mxu0 0.0
        %507 = vmatprep.subr.mxu0 0.0
        %508 = vmatpush2.xpose.msra.mxu0 0.0
        %509 = vmatprep.subr.mxu0 0.0
        %510 = vmatpush2.xpose.msra.mxu0 0.0
        %511 = vmatprep.subr.mxu0 0.0
        %512 = vmatpush2.xpose.msra.mxu0 0.0
        %513 = vmatprep.subr.mxu0 0.0
        %514 = vmatpush2.xpose.msra.mxu0 0.0
        %515 = vmatprep.subr.mxu0 0.0
        %516 = vmatpush2.xpose.msra.mxu0 0.0
        %517 = vmatprep.subr.mxu0 0.0
        %518 = vmatpush2.xpose.msra.mxu0 0.0
        %519 = vmatprep.subr.mxu0 0.0
        %520 = vmatpush2.xpose.msra.mxu0 0.0
        %521 = vmatprep.subr.mxu0 0.0
        %522 = vmatpush2.xpose.msra.mxu0 0.0
        %523 = vmatprep.subr.mxu0 0.0
        %524 = vmatpush2.xpose.msra.mxu0 0.0
        %525 = vmatprep.subr.mxu0 0.0
        %526 = vmatpush2.xpose.msra.mxu0 0.0
        %527 = vmatprep.subr.mxu0 0.0
        %528 = vmatpush2.xpose.msra.mxu0 0.0
        %529 = vmatprep.subr.mxu0 0.0
        %530 = vmatpush2.xpose.msra.mxu0 0.0
        %531 = vmatprep.subr.mxu0 0.0
        %532 = vmatpush2.xpose.msra.mxu0 0.0
        %533 = vmatprep.subr.mxu0 0.0
        %534 = vmatpush2.xpose.msra.mxu0 0.0
        %535 = vmatprep.mubr.f32.mxu0 0.0
        %536 = vmatmul.mubr.f32.gmra.mxu0 %v370
        %v537 = vpop.f32.mrf.mxu0
        %v538 = vadd.f32 0.0, %v537
        %v539 = vpop.f32.mrf.mxu0
        %540 = vmatprep.mubr.f32.mxu0 0.0
        %541 = vmatmul.mubr.f32.gmra.mxu0 %v371
        %v542 = vpop.f32.mrf.mxu0
        %v543 = vadd.f32 0.0, %v542
        %v544 = vpop.f32.mrf.mxu0
        %545 = vdwg.mxu0
        %v546 = vmul.f32 %v538, 2.0
        %v547 = vmul.f32 %v543, 2.0
        %v548 = vmul.f32 %v546, 1.442695
        %v549 = vpow.pop %v548
        %v550 = vmul.f32 %v547, 1.442695
        %v551 = vpow.pop %v550
        %552 = vmatprep.subr.mxu0 0.0
        %553 = vmatpush1.xpose.msra.mxu0 0.0
        %554 = vmatprep.subr.mxu0 0.0
        %555 = vmatpush1.xpose.msra.mxu0 0.0
        %556 = vmatprep.subr.mxu0 0.0
        %557 = vmatpush1.xpose.msra.mxu0 0.0
        %558 = vmatprep.subr.mxu0 0.0
        %559 = vmatpush1.xpose.msra.mxu0 0.0
        %560 = vmatprep.subr.mxu0 0.0
        %561 = vmatpush1.xpose.msra.mxu0 0.0
        %562 = vmatprep.subr.mxu0 0.0
        %563 = vmatpush1.xpose.msra.mxu0 0.0
        %564 = vmatprep.subr.mxu0 0.0
        %565 = vmatpush1.xpose.msra.mxu0 0.0
        %566 = vmatprep.subr.mxu0 0.0
        %567 = vmatpush1.xpose.msra.mxu0 0.0
        %568 = vmatprep.subr.mxu0 0.0
        %569 = vmatpush1.xpose.msra.mxu0 0.0
        %570 = vmatprep.subr.mxu0 0.0
        %571 = vmatpush1.xpose.msra.mxu0 0.0
        %572 = vmatprep.subr.mxu0 0.0
        %573 = vmatpush1.xpose.msra.mxu0 0.0
        %574 = vmatprep.subr.mxu0 0.0
        %575 = vmatpush1.xpose.msra.mxu0 0.0
        %576 = vmatprep.subr.mxu0 0.0
        %577 = vmatpush1.xpose.msra.mxu0 0.0
        %578 = vmatprep.subr.mxu0 0.0
        %579 = vmatpush1.xpose.msra.mxu0 0.0
        %580 = vmatprep.subr.mxu0 0.0
        %581 = vmatpush1.xpose.msra.mxu0 %v413
        %582 = vmatprep.subr.mxu0 0.0
        %583 = vmatpush1.xpose.msra.mxu0 %v412
        %584 = vmatprep.subr.mxu0 0.0
        %585 = vmatpush2.xpose.msra.mxu0 0.0
        %586 = vmatprep.subr.mxu0 0.0
        %587 = vmatpush2.xpose.msra.mxu0 0.0
        %588 = vmatprep.subr.mxu0 0.0
        %589 = vmatpush2.xpose.msra.mxu0 0.0
        %590 = vmatprep.subr.mxu0 0.0
        %591 = vmatpush2.xpose.msra.mxu0 0.0
        %592 = vmatprep.subr.mxu0 0.0
        %593 = vmatpush2.xpose.msra.mxu0 0.0
        %594 = vmatprep.subr.mxu0 0.0
        %595 = vmatpush2.xpose.msra.mxu0 0.0
        %596 = vmatprep.subr.mxu0 0.0
        %597 = vmatpush2.xpose.msra.mxu0 0.0
        %598 = vmatprep.subr.mxu0 0.0
        %599 = vmatpush2.xpose.msra.mxu0 0.0
        %600 = vmatprep.subr.mxu0 0.0
        %601 = vmatpush2.xpose.msra.mxu0 0.0
        %602 = vmatprep.subr.mxu0 0.0
        %603 = vmatpush2.xpose.msra.mxu0 0.0
        %604 = vmatprep.subr.mxu0 0.0
        %605 = vmatpush2.xpose.msra.mxu0 0.0
        %606 = vmatprep.subr.mxu0 0.0
        %607 = vmatpush2.xpose.msra.mxu0 0.0
        %608 = vmatprep.subr.mxu0 0.0
        %609 = vmatpush2.xpose.msra.mxu0 0.0
        %610 = vmatprep.subr.mxu0 0.0
        %611 = vmatpush2.xpose.msra.mxu0 0.0
        %612 = vmatprep.subr.mxu0 0.0
        %613 = vmatpush2.xpose.msra.mxu0 0.0
        %614 = vmatprep.subr.mxu0 0.0
        %615 = vmatpush2.xpose.msra.mxu0 0.0
        %616 = vmatprep.mubr.f32.mxu0 0.0
        %617 = vmatmul.mubr.f32.gmra.mxu0 %v370
        %v618 = vpop.f32.mrf.mxu0
        %v619 = vadd.f32 0.0, %v618
        %v620 = vpop.f32.mrf.mxu0
        %621 = vmatprep.mubr.f32.mxu0 0.0
        %622 = vmatmul.mubr.f32.gmra.mxu0 %v371
        %v623 = vpop.f32.mrf.mxu0
        %v624 = vadd.f32 0.0, %v623
        %v625 = vpop.f32.mrf.mxu0
        %626 = vdwg.mxu0
        %v627 = vmul.f32 %v619, 2.0
        %v628 = vmul.f32 %v624, 2.0
        %v629 = vmul.f32 %v627, 1.442695
        %v630 = vpow.pop %v629
        %v631 = vmul.f32 %v628, 1.442695
        %v632 = vpow.pop %v631
        %633 = vmatprep.subr.mxu0 0.0
        %634 = vmatpush1.xpose.msra.mxu0 0.0
        %635 = vmatprep.subr.mxu0 0.0
        %636 = vmatpush1.xpose.msra.mxu0 0.0
        %637 = vmatprep.subr.mxu0 0.0
        %638 = vmatpush1.xpose.msra.mxu0 0.0
        %639 = vmatprep.subr.mxu0 0.0
        %640 = vmatpush1.xpose.msra.mxu0 0.0
        %641 = vmatprep.subr.mxu0 0.0
        %642 = vmatpush1.xpose.msra.mxu0 0.0
        %643 = vmatprep.subr.mxu0 0.0
        %644 = vmatpush1.xpose.msra.mxu0 0.0
        %645 = vmatprep.subr.mxu0 0.0
        %646 = vmatpush1.xpose.msra.mxu0 0.0
        %647 = vmatprep.subr.mxu0 0.0
        %648 = vmatpush1.xpose.msra.mxu0 0.0
        %649 = vmatprep.subr.mxu0 0.0
        %650 = vmatpush1.xpose.msra.mxu0 0.0
        %651 = vmatprep.subr.mxu0 0.0
        %652 = vmatpush1.xpose.msra.mxu0 0.0
        %653 = vmatprep.subr.mxu0 0.0
        %654 = vmatpush1.xpose.msra.mxu0 0.0
        %655 = vmatprep.subr.mxu0 0.0
        %656 = vmatpush1.xpose.msra.mxu0 0.0
        %657 = vmatprep.subr.mxu0 0.0
        %658 = vmatpush1.xpose.msra.mxu0 0.0
        %659 = vmatprep.subr.mxu0 0.0
        %660 = vmatpush1.xpose.msra.mxu0 0.0
        %661 = vmatprep.subr.mxu0 0.0
        %662 = vmatpush1.xpose.msra.mxu0 %v413
        %663 = vmatprep.subr.mxu0 0.0
        %664 = vmatpush1.xpose.msra.mxu0 %v412
        %665 = vmatprep.subr.mxu0 0.0
        %666 = vmatpush2.xpose.msra.mxu0 0.0
        %667 = vmatprep.subr.mxu0 0.0
        %668 = vmatpush2.xpose.msra.mxu0 0.0
        %669 = vmatprep.subr.mxu0 0.0
        %670 = vmatpush2.xpose.msra.mxu0 0.0
        %671 = vmatprep.subr.mxu0 0.0
        %672 = vmatpush2.xpose.msra.mxu0 0.0
        %673 = vmatprep.subr.mxu0 0.0
        %674 = vmatpush2.xpose.msra.mxu0 0.0
        %675 = vmatprep.subr.mxu0 0.0
        %676 = vmatpush2.xpose.msra.mxu0 0.0
        %677 = vmatprep.subr.mxu0 0.0
        %678 = vmatpush2.xpose.msra.mxu0 0.0
        %679 = vmatprep.subr.mxu0 0.0
        %680 = vmatpush2.xpose.msra.mxu0 0.0
        %681 = vmatprep.subr.mxu0 0.0
        %682 = vmatpush2.xpose.msra.mxu0 0.0
        %683 = vmatprep.subr.mxu0 0.0
        %684 = vmatpush2.xpose.msra.mxu0 0.0
        %685 = vmatprep.subr.mxu0 0.0
        %686 = vmatpush2.xpose.msra.mxu0 0.0
        %687 = vmatprep.subr.mxu0 0.0
        %688 = vmatpush2.xpose.msra.mxu0 0.0
        %689 = vmatprep.subr.mxu0 0.0
        %690 = vmatpush2.xpose.msra.mxu0 0.0
        %691 = vmatprep.subr.mxu0 0.0
        %692 = vmatpush2.xpose.msra.mxu0 0.0
        %693 = vmatprep.subr.mxu0 0.0
        %694 = vmatpush2.xpose.msra.mxu0 0.0
        %695 = vmatprep.subr.mxu0 0.0
        %696 = vmatpush2.xpose.msra.mxu0 0.0
        %697 = vmatprep.mubr.f32.mxu0 0.0
        %698 = vmatmul.mubr.f32.gmra.mxu0 %v384
        %v699 = vpop.f32.mrf.mxu0
        %v700 = vadd.f32 0.0, %v699
        %v701 = vpop.f32.mrf.mxu0
        %702 = vmatprep.mubr.f32.mxu0 0.0
        %703 = vmatmul.mubr.f32.gmra.mxu0 %v385
        %v704 = vpop.f32.mrf.mxu0
        %v705 = vadd.f32 0.0, %v704
        %v706 = vpop.f32.mrf.mxu0
        %707 = vdwg.mxu0
        %v708 = vmul.f32 %v700, 2.0
        %v709 = vmul.f32 %v705, 2.0
        %v710 = vmul.f32 %v708, 1.442695
        %v711 = vpow.pop %v710
        %v712 = vmul.f32 %v709, 1.442695
        %v713 = vpow.pop %v712
        %s714 = scalar_lea.vmem [#allocation2], %s337
        %v715 = vld [vmem:[%s714] sm:$0xff]
        %v716 = vld [vmem:[%s714 + $0x8] sm:$0xff]
        %vm717 = vcmask 130048
        %v718 = vsel %vm717, %v549, 0.0
        %719 = vadd.xlane.f32.xlu0 %v718
        %v720 = vpop.xlane.xlu0 %719
        %v721 = vsel %vm717, %v551, 0.0
        %722 = vadd.xlane.f32.xlu0 %v721
        %v723 = vpop.xlane.xlu0 %722
        %v724 = vsel %vm717, %v630, 0.0
        %725 = vadd.xlane.f32.xlu0 %v724
        %v726 = vpop.xlane.xlu0 %725
        %v727 = vsel %vm717, %v632, 0.0
        %728 = vadd.xlane.f32.xlu0 %v727
        %v729 = vpop.xlane.xlu0 %728
        %v730 = vadd.f32 %v720, %v726
        %v731 = vadd.f32 %v723, %v729
        %v732 = vadd.f32 %v715, %v730
        %v733 = vadd.f32 %v716, %v731
        %vm734 = vcmask 7168
        %735 = vst.msk [vmem:[%s714] sm:$0xff] %vm734, %v732
        %736 = vst.msk [vmem:[%s714 + $0x8] sm:$0xff] %vm734, %v733
        %s737 = scalar_lea.vmem [#allocation3], %s337
        %v738 = vld [vmem:[%s737] sm:$0xff]
        %v739 = vld [vmem:[%s737 + $0x8] sm:$0xff]
        %v740 = vsel %vm717, %v711, 0.0
        %741 = vadd.xlane.f32.xlu0 %v740
        %v742 = vpop.xlane.xlu0 %741
        %v743 = vsel %vm717, %v713, 0.0
        %744 = vadd.xlane.f32.xlu0 %v743
        %v745 = vpop.xlane.xlu0 %744
        %v746 = vadd.f32 %v738, %v742
        %v747 = vadd.f32 %v739, %v745
        %748 = vst.msk [vmem:[%s737] sm:$0xff] %vm734, %v746
        %749 = vst.msk [vmem:[%s737 + $0x8] sm:$0xff] %vm734, %v747
        %750 = vxpose.xlu0.b32.start [1/16] %v630, 128
        %751 = vxpose.xlu0.b32.cont [2/16] %v632, 128
        %752 = vxpose.xlu0.b32.cont [3/16] 0.0, 128
        %753 = vxpose.xlu0.b32.cont [4/16] 0.0, 128
        %754 = vxpose.xlu0.b32.cont [5/16] 0.0, 128
        %755 = vxpose.xlu0.b32.cont [6/16] 0.0, 128
        %756 = vxpose.xlu0.b32.cont [7/16] 0.0, 128
        %757 = vxpose.xlu0.b32.cont [8/16] 0.0, 128
        %758 = vxpose.xlu0.b32.cont [9/16] 0.0, 128
        %759 = vxpose.xlu0.b32.cont [10/16] 0.0, 128
        %760 = vxpose.xlu0.b32.cont [11/16] 0.0, 128
        %761 = vxpose.xlu0.b32.cont [12/16] 0.0, 128
        %762 = vxpose.xlu0.b32.cont [13/16] 0.0, 128
        %763 = vxpose.xlu0.b32.cont [14/16] 0.0, 128
        %764 = vxpose.xlu0.b32.cont [15/16] 0.0, 128
        %765 = vxpose.xlu0.b32.end [16/16] 0.0, 128
        %v766 = vpop.trf.xlu0
        %v767 = vpop.trf.xlu0
        %v768 = vpop.trf.xlu0
        %v769 = vpop.trf.xlu0
        %v770 = vpop.trf.xlu0
        %v771 = vpop.trf.xlu0
        %v772 = vpop.trf.xlu0
        %v773 = vpop.trf.xlu0
        %v774 = vpop.trf.xlu0
        %v775 = vpop.trf.xlu0
        %v776 = vpop.trf.xlu0
        %v777 = vpop.trf.xlu0
        %v778 = vpop.trf.xlu0
        %v779 = vpop.trf.xlu0
        %v780 = vpop.trf.xlu0
        %v781 = vpop.trf.xlu0
        %v783 = vsel %vm717, %v766, 0
        %v786 = vsel %vm717, %v767, 0
        %788 = vmatprep.subr.mxu0 0.0
        %789 = vmatpush1.msra.mxu0 0.0
        %790 = vmatprep.subr.mxu0 0.0
        %791 = vmatpush1.msra.mxu0 0.0
        %792 = vmatprep.subr.mxu0 0.0
        %793 = vmatpush1.msra.mxu0 0.0
        %794 = vmatprep.subr.mxu0 0.0
        %795 = vmatpush1.msra.mxu0 0.0
        %796 = vmatprep.subr.mxu0 0.0
        %797 = vmatpush1.msra.mxu0 0.0
        %798 = vmatprep.subr.mxu0 0.0
        %799 = vmatpush1.msra.mxu0 0.0
        %800 = vmatprep.subr.mxu0 0.0
        %801 = vmatpush1.msra.mxu0 0.0
        %802 = vmatprep.subr.mxu0 0.0
        %803 = vmatpush1.msra.mxu0 0.0
        %804 = vmatprep.subr.mxu0 0.0
        %805 = vmatpush1.msra.mxu0 0.0
        %806 = vmatprep.subr.mxu0 0.0
        %807 = vmatpush1.msra.mxu0 0.0
        %808 = vmatprep.subr.mxu0 0.0
        %809 = vmatpush1.msra.mxu0 0.0
        %810 = vmatprep.subr.mxu0 0.0
        %811 = vmatpush1.msra.mxu0 0.0
        %812 = vmatprep.subr.mxu0 0.0
        %813 = vmatpush1.msra.mxu0 0.0
        %814 = vmatprep.subr.mxu0 0.0
        %815 = vmatpush1.msra.mxu0 0.0
        %816 = vmatprep.subr.mxu0 0.0
        %817 = vmatpush1.msra.mxu0 1.0
        %818 = vmatprep.subr.mxu0 0.0
        %819 = vmatpush1.msra.mxu0 1.0
        %820 = vmatprep.subr.mxu0 0.0
        %821 = vmatpush2.msra.mxu0 0.0
        %822 = vmatprep.subr.mxu0 0.0
        %823 = vmatpush2.msra.mxu0 0.0
        %824 = vmatprep.subr.mxu0 0.0
        %825 = vmatpush2.msra.mxu0 0.0
        %826 = vmatprep.subr.mxu0 0.0
        %827 = vmatpush2.msra.mxu0 0.0
        %828 = vmatprep.subr.mxu0 0.0
        %829 = vmatpush2.msra.mxu0 0.0
        %830 = vmatprep.subr.mxu0 0.0
        %831 = vmatpush2.msra.mxu0 0.0
        %832 = vmatprep.subr.mxu0 0.0
        %833 = vmatpush2.msra.mxu0 0.0
        %834 = vmatprep.subr.mxu0 0.0
        %835 = vmatpush2.msra.mxu0 0.0
        %836 = vmatprep.subr.mxu0 0.0
        %837 = vmatpush2.msra.mxu0 0.0
        %838 = vmatprep.subr.mxu0 0.0
        %839 = vmatpush2.msra.mxu0 0.0
        %840 = vmatprep.subr.mxu0 0.0
        %841 = vmatpush2.msra.mxu0 0.0
        %842 = vmatprep.subr.mxu0 0.0
        %843 = vmatpush2.msra.mxu0 0.0
        %844 = vmatprep.subr.mxu0 0.0
        %845 = vmatpush2.msra.mxu0 0.0
        %846 = vmatprep.subr.mxu0 0.0
        %847 = vmatpush2.msra.mxu0 0.0
        %848 = vmatprep.subr.mxu0 0.0
        %849 = vmatpush2.msra.mxu0 0.0
        %850 = vmatprep.subr.mxu0 0.0
        %851 = vmatpush2.msra.mxu0 0.0
        %852 = vmatprep.mubr.f32.mxu0 0.0
        %853 = vmatmul.mubr.f32.gmra.mxu0 %v783
        %v854 = vpop.f32.mrf.mxu0
        %v855 = vadd.f32 0.0, %v854
        %v856 = vpop.f32.mrf.mxu0
        %857 = vmatprep.mubr.f32.mxu0 0.0
        %858 = vmatmul.mubr.f32.gmra.mxu0 %v786
        %v859 = vpop.f32.mrf.mxu0
        %v860 = vadd.f32 0.0, %v859
        %v861 = vpop.f32.mrf.mxu0
        %862 = vdwg.mxu0
        %s863 = scalar_lea.vmem [#allocation3], %s338
        %v864 = vld [vmem:[%s863] sm:$0xff]
        %v865 = vld [vmem:[%s863 + $0x8] sm:$0xff]
        %v866 = vadd.f32 %v864, %v855
        %v867 = vadd.f32 %v865, %v860
        %868 = vst.msk [vmem:[%s863] sm:$0xff] %vm734, %v866
        %869 = vst.msk [vmem:[%s863 + $0x8] sm:$0xff] %vm734, %v867
        %p870 = scmp.eq.s32.totalorder %s29, 1
        %p871 = scmp.eq.s32.totalorder %s30, 1
        %p872 = pnand %p870, %p871
        %p873 = pneg %p872
        // Predicated region
        $region61: #{tpu_custom_call.1} parent=35 // pred_check
          _
        $region62: #{tpu_custom_call.1} parent=35 // pred_check_branch
          %875 = sbr.rel (%p872) target = $region64
        $region63: #{tpu_custom_call.1} parent=35 // pred_region
          %v876 = vld [vmem:[#allocation2] sm:$0xff]
          %v877 = vld [vmem:[#allocation2 + $0x8] sm:$0xff]
          %v878 = vld [vmem:[#allocation2 + $0x10] sm:$0xff]
          %v879 = vld [vmem:[#allocation2 + $0x18] sm:$0xff]
          %v880 = vld [vmem:[#allocation3] sm:$0xff]
          %v881 = vld [vmem:[#allocation3 + $0x8] sm:$0xff]
          %v882 = vld [vmem:[#allocation3 + $0x10] sm:$0xff]
          %v883 = vld [vmem:[#allocation3 + $0x18] sm:$0xff]
          %v884 = vld [vmem:[#allocation4] sm:$0xff]
          %v885 = vld [vmem:[#allocation4 + $0x8] sm:$0xff]
          %v886 = vld [vmem:[#allocation4 + $0x10] sm:$0xff]
          %v887 = vld [vmem:[#allocation4 + $0x18] sm:$0xff]
          %v888 = vlog2.pop %v876
          %v889 = vmul.f32 %v888, 0.6931472
          %v890 = vlog2.pop %v877
          %v891 = vmul.f32 %v890, 0.6931472
          %v892 = vlog2.pop %v878
          %v893 = vmul.f32 %v892, 0.6931472
          %v894 = vlog2.pop %v879
          %v895 = vmul.f32 %v894, 0.6931472
          %v896 = vsub.f32 %v889, %v884
          %v897 = vsub.f32 %v891, %v885
          %v898 = vsub.f32 %v893, %v886
          %v899 = vsub.f32 %v895, %v887
          %v900 = vlog2.pop %v880
          %v901 = vmul.f32 %v900, 0.6931472
          %v902 = vlog2.pop %v881
          %v903 = vmul.f32 %v902, 0.6931472
          %v904 = vlog2.pop %v882
          %v905 = vmul.f32 %v904, 0.6931472
          %v906 = vlog2.pop %v883
          %v907 = vmul.f32 %v906, 0.6931472
          %v908 = vsub.f32 %v901, %v884
          %v909 = vsub.f32 %v903, %v885
          %v910 = vsub.f32 %v905, %v886
          %v911 = vsub.f32 %v907, %v887
          %v912 = vadd.f32 %v896, %v908
          %v913 = vadd.f32 %v897, %v909
          %v914 = vadd.f32 %v898, %v910
          %v915 = vadd.f32 %v899, %v911
          %v916 = vsel %vm734, %v912, 0.0
          %v917 = vsel %vm734, %v913, 0.0
          %v918 = vadd.f32 %v916, %v917
          %v919 = vsel %vm734, %v914, 0.0
          %v920 = vadd.f32 %v918, %v919
          %v921 = vsel %vm734, %v915, 0.0
          %v922 = vadd.f32 %v920, %v921
          %923 = vadd.xlane.f32.xlu0 %v922
          %v924 = vpop.xlane.xlu0 %923
          %v925 = vrot.slane %v924, 4
          %v926 = vadd.f32 %v924, %v925
          %v927 = vrot.slane %v926, 2
          %v928 = vadd.f32 %v926, %v927
          %v929 = vrot.slane %v928, 1
          %v930 = vadd.f32 %v928, %v929
          %s931 = vtos %v930
          %s932 = smul.f32 %s931, 0.015625
          %s933 = scalar_lea.smem [#allocation13], 0
          %934 = sst [smem:[%s933]] %s932
        $region64: #{tpu_custom_call.1} parent=35 // pred_fallthru
          _
        // Predicated region
        $region65: #{tpu_custom_call.1} parent=35 // pred_check
          %p935 = pneg %p154
        $region66: #{tpu_custom_call.1} parent=35 // pred_check_branch
          %937 = sbr.rel (%p935) target = $region68
        $region67: #{tpu_custom_call.1} parent=35 // pred_region
          %s939 = ssub.s32 16, 16
          %940 = vsyncadd [#allocation7], %s939
          %943 = dma.smem_to_hbm [#allocation13], 16, %s4, [#allocation7]
        $region68: #{tpu_custom_call.1} parent=35 // pred_fallthru
          _
        // Predicated region
        $region69: #{tpu_custom_call.1} parent=35 // pred_check
          %p944 = pneg %p154
        $region70: #{tpu_custom_call.1} parent=35 // pred_check_branch
          %946 = sbr.rel (%p944) target = $region72
        $region71: #{tpu_custom_call.1} parent=35 // pred_region
          %947 = dma.done [#allocation7], 16
        $region72: #{tpu_custom_call.1} parent=35 // pred_fallthru
          _
        %948 = sfence
      $region36: #{tpu_custom_call.1} parent=5 // pred_fallthru
        _
      %p949 = scmp.le.s32.totalorder 2, %s20
      // Predicated region
      $region73: #{tpu_custom_call.1} parent=5 // pred_check
        %p950 = pneg %p949
      $region74: #{tpu_custom_call.1} parent=5 // pred_check_branch
        %952 = sbr.rel (%p950) target = $region76
      $region75: #{tpu_custom_call.1} parent=5 // pred_region
        %s953 = ssub.s32 %s20, 2
      $region76: #{tpu_custom_call.1} parent=5 // pred_fallthru
        _
    $region6: #{tpu_custom_call.1} parent=1 // loop_footer
      %s24 = sadd.s32 1, %s20
    $region7: #{tpu_custom_call.1} parent=1 // loop_footer_branch
      %19 = sbr.rel target = $region3
    $region8: #{tpu_custom_call.1} parent=1 // loop_exit
      _
    %954 = vsyncpa [#allocation6], 1
    %s955 = scalar_lea.sflag [#allocation6], 1
    %956 = vsyncpa %s955, 1
    %957 = vsyncpa [#allocation9], 1
    %s958 = scalar_lea.sflag [#allocation9], 1
    %959 = vsyncpa %s958, 1
    %960 = vsyncpa [#allocation12], 1
    %s961 = scalar_lea.sflag [#allocation12], 1
    %962 = vsyncpa %s961, 1
    %963 = vsyncpa [#allocation7], 1
    %s964 = scalar_lea.sflag [#allocation7], 1
    %965 = vsyncpa %s964, 1

</llo_original>
